<compile_context>
chip_gen: v7x
topology: tpu7x:2x2x1
jax: 0.10.0
libtpu: 0.0.40
codegen_flags: <defaults>
</compile_context>

<pallas_src>
import functools
from typing import Callable, Dict, List, Optional

import jax
import jax.numpy as jnp
from jax.experimental import pallas as pl
from jax.experimental.pallas import tpu as pltpu

_LANE = 128
_SUBLANE = 8


@functools.lru_cache(maxsize=None)
def _vmem_capacity_bytes() -> int:
    """Physical VMEM on the attached TPU; conservative fallback if unknown."""
    try:
        cap = int(pltpu.get_tpu_info().vmem_capacity_bytes)
        if cap > 0:
            return cap
    except Exception:
        pass
    # v7x per-TC VMEM (64 MiB) is the smallest of v5e/v6e/v7x -> safe default.
    return 64 * 1024 * 1024


@functools.lru_cache(maxsize=None)
def _min_pallas_bytes() -> int:
    """Per-tensor size below which the fused XLA add beats a custom call.

    Bandwidth-aware crossover: on v7x (~3.2 TB/s HBM) the fixed pallas_call
    dispatch cost covers a larger streaming size than on v5e/v6e.
    """
    try:
        kind = jax.devices()[0].device_kind.lower()
    except Exception:
        kind = ""
    if "v7" in kind:
        return 4 * 1024 * 1024
    return 2 * 1024 * 1024


def _make_sum_kernel(n_inputs: int, acc_dtype):
    """Kernel body: elementwise sum of `n_inputs` VMEM tiles into one tile.

    Per output vreg this is n loads, n-1 VALU adds, 1 store -- nowhere near
    binding against HBM DMA on v5e/v6e/v7x, so the body is deliberately the
    simplest linear add chain (no tree reduction, no pre-scaling).
    """

    def kernel(*refs):
        in_refs = refs[:n_inputs]
        out_ref = refs[n_inputs]
        acc = in_refs[0][...].astype(acc_dtype)
        for r in in_refs[1:]:
            acc = acc + r[...].astype(acc_dtype)
        out_ref[...] = acc.astype(out_ref.dtype)

    return kernel


def pallas_addition(tensors: List[jax.Array], *,
                    force_pallas: bool = False,
                    tile_rows: Optional[int] = None) -> jax.Array:
    """Elementwise sum of a list of same-shaped tensors via a tiled Pallas kernel."""
    assert len(tensors) >= 1
    shape = tensors[0].shape
    dtype = tensors[0].dtype
    for t in tensors:
        assert t.shape == shape and t.dtype == dtype, (
            "pallas_addition requires same-shape, same-dtype inputs")

    if len(tensors) == 1:
        return tensors[0]

    total = 1
    for d in shape:
        total *= d
    itemsize = jnp.dtype(dtype).itemsize
    nbytes = total * itemsize

    # Small/mid tensors: plain fused XLA add is already at the HBM roofline
    # and avoids the custom-call fixed cost.
    if (not force_pallas and tile_rows is None
            and nbytes < _min_pallas_bytes()):
        return functools.reduce(jnp.add, tensors)

    n = len(tensors)

    # f32 accumulation for sub-32-bit floats (bf16/fp16); single downcast at
    # the store.  (Slightly *more* accurate than the PyTorch pairwise-rounded
    # reference.)  Integers accumulate in the input dtype (wraparound), which
    # matches jnp/torch semantics.
    if jnp.issubdtype(dtype, jnp.floating) and itemsize < 4:
        acc_dtype = jnp.float32
    else:
        acc_dtype = dtype
    acc_itemsize = jnp.dtype(acc_dtype).itemsize

    # ---- split off the <128-element ragged tail (rare) ----
    # The aligned prefix is a contiguous offset-0 window (no per-input padded
    # copies, no output slice pass); the tiny tail is summed by XLA.
    tail_len = total % _LANE
    aligned = total - tail_len
    if aligned == 0:
        return functools.reduce(jnp.add, tensors)

    # ---- lane-dense slab geometry (rows, lane_w) for the aligned prefix ----
    lane_w = None
    for w in (2048, 1024, 512, 256, _LANE):
        if aligned % w == 0 and (aligned // w) >= _SUBLANE:
            lane_w = w
            break
    if lane_w is None:
        for w in (2048, 1024, 512, 256, _LANE):
            if aligned % w == 0:      # 128 always divides `aligned`
                lane_w = w
                break
    rows = aligned // lane_w

    # ---- generation-aware tile sizing (byte cap, no fixed row cap) ----
    # Total VMEM ~= (n inputs + 1 output) * 2 pipeline buffers * block
    #               + 1 block-sized accumulator temporary (acc_dtype).
    vmem_cap = _vmem_capacity_bytes()
    budget = min(vmem_cap // 2, 64 * 1024 * 1024)
    bytes_per_row = lane_w * ((n + 1) * 2 * itemsize + acc_itemsize)
    if tile_rows is None:
        tr = budget // bytes_per_row
        tr = max(_SUBLANE, (tr // _SUBLANE) * _SUBLANE)
    else:
        tr = max(_SUBLANE, (int(tile_rows) // _SUBLANE) * _SUBLANE)

    if rows <= tr:
        # Whole slab fits in one block; a full-array block satisfies the
        # (8, 128) tiling rule even if `rows` is not a multiple of 8.
        tr = rows
        num_tiles = 1
    else:
        num_tiles = pl.cdiv(rows, tr)   # last block may be partial (masked)

    flats = [jnp.reshape(t, (-1,)) for t in tensors]
    if tail_len == 0:
        slabs = [f.reshape(rows, lane_w) for f in flats]
    else:
        slabs = [f[:aligned].reshape(rows, lane_w) for f in flats]

    kernel = _make_sum_kernel(n, acc_dtype)
    block = pl.BlockSpec((tr, lane_w), lambda i: (i, 0))

    vmem_usage = tr * bytes_per_row
    vmem_limit = int(min(vmem_cap * 9 // 10,
                         max(vmem_usage + (4 << 20), 32 << 20)))

    # TODO(synk): verify with xprof that "parallel" shards the 1-D grid across
    # both v7x TensorCores; switch to pltpu.CORE_PARALLEL if it does not.
    out = pl.pallas_call(
        kernel,
        out_shape=jax.ShapeDtypeStruct((rows, lane_w), dtype),
        grid_spec=pltpu.PrefetchScalarGridSpec(
            num_scalar_prefetch=0,
            grid=(num_tiles,),
            in_specs=[block] * n,
            out_specs=block,
        ),
        compiler_params=pltpu.CompilerParams(
            dimension_semantics=("parallel",),
            vmem_limit_bytes=vmem_limit,
        ),
        cost_estimate=pl.CostEstimate(
            flops=(n - 1) * aligned,
            transcendentals=0,
            bytes_accessed=(n + 1) * aligned * itemsize,
        ),
    )(*slabs)

    if tail_len == 0:
        return out.reshape(shape)
    tail_sum = functools.reduce(jnp.add, [f[aligned:] for f in flats])
    return jnp.concatenate([out.reshape(-1), tail_sum]).reshape(shape)


class AdditionOutputModule:
    """JAX/Pallas port of the PyTorch AdditionOutputModule.

    forward(inputs) sets inputs[output_key] = function([inputs[p] for p in props_in]).
    """

    def __init__(self, props_in: List[str], output_key: str,
                 function: Callable[[List[jax.Array]], jax.Array]):
        self.props_in = props_in
        self.output_key = output_key
        self.model_outputs = [output_key]
        self.function = function

    def forward(self, inputs: Dict[str, jax.Array]) -> Dict[str, jax.Array]:
        inputs[self.output_key] = self.function(
            [inputs[prop] for prop in self.props_in])
        return inputs

    __call__ = forward


if __name__ == "__main__":
    key = jax.random.PRNGKey(0)
    k1, k2, k3 = jax.random.split(key, 3)

    # ---- 1. Module-level test at the small NCHW shape. Too small for a
    #         profitable pallas_call, so it dispatches to the fused XLA add. ----
    shape = (2, 4, 16, 16)
    a = jax.random.normal(k1, shape, dtype=jnp.float32)
    b = jax.random.normal(k2, shape, dtype=jnp.float32)
    c = jax.random.normal(k3, shape, dtype=jnp.float32)

    module = AdditionOutputModule(
        props_in=["energy_a", "energy_b", "energy_c"],
        output_key="energy_total",
        function=pallas_addition,
    )
    inputs = {"energy_a": a, "energy_b": b, "energy_c": c}
    outputs = module(inputs)
    result = outputs["energy_total"]
    jax.block_until_ready(result)
    ref = a + b + c
    assert result.shape == shape
    assert jnp.allclose(result, ref, atol=1e-6), "module output mismatch"

    # ---- 2. Force the Pallas kernel path on the same small inputs. ----
    res_small = pallas_addition([a, b, c], force_pallas=True)
    jax.block_until_ready(res_small)
    assert jnp.allclose(res_small, ref, atol=1e-6), "forced-pallas mismatch"

    # ---- 3. Tiled multi-block path (1 MiB/tensor, partial boundary block). ----
    shape2 = (4, 8, 64, 128)
    ka, kb, kc = jax.random.split(jax.random.PRNGKey(1), 3)
    a2 = jax.random.normal(ka, shape2, dtype=jnp.float32)
    b2 = jax.random.normal(kb, shape2, dtype=jnp.float32)
    c2 = jax.random.normal(kc, shape2, dtype=jnp.float32)
    res2 = pallas_addition([a2, b2, c2], force_pallas=True, tile_rows=48)
    jax.block_until_ready(res2)
    assert jnp.allclose(res2, a2 + b2 + c2, atol=1e-5), "tiled-grid mismatch"

    # ---- 4. Ragged path (flat size not a multiple of 128):
    #         aligned prefix via Pallas + <128-element tail via XLA. ----
    shape3 = (3, 5, 7, 9)
    kd, ke = jax.random.split(jax.random.PRNGKey(2), 2)
    a3 = jax.random.normal(kd, shape3, dtype=jnp.float32)
    b3 = jax.random.normal(ke, shape3, dtype=jnp.float32)
    res3 = pallas_addition([a3, b3], force_pallas=True)
    jax.block_until_ready(res3)
    assert res3.shape == shape3
    assert jnp.allclose(res3, a3 + b3, atol=1e-6), "ragged-tail mismatch"

    # ---- 5. bf16 inputs: f32 accumulation inside the kernel. ----
    a4 = a.astype(jnp.bfloat16)
    b4 = b.astype(jnp.bfloat16)
    c4 = c.astype(jnp.bfloat16)
    res4 = pallas_addition([a4, b4, c4], force_pallas=True)
    jax.block_until_ready(res4)
    ref4 = (a4.astype(jnp.float32) + b4.astype(jnp.float32)
            + c4.astype(jnp.float32)).astype(jnp.bfloat16)
    assert jnp.allclose(res4.astype(jnp.float32), ref4.astype(jnp.float32),
                        atol=1e-2, rtol=1e-2), "bf16 mismatch"

    print("KERNEL_OK")
</pallas_src>

<mosaic_0001>
module attributes {stable_mosaic.version = 11 : i64} {
  func.func @kernel(%arg0: i32, %arg1: memref<8x256xf32, #tpu.memory_space<vmem>>, %arg2: memref<8x256xf32, #tpu.memory_space<vmem>>, %arg3: memref<8x256xf32, #tpu.memory_space<vmem>>, %arg4: memref<8x256xf32, #tpu.memory_space<vmem>>) attributes {dimension_semantics = [#tpu.dimension_semantics<parallel>], iteration_bounds = array<i64: 1>, scalar_prefetch = 0 : i64, scratch_operands = 0 : i64, tpu.core_type = #tpu.core_type<tc>, window_params = [{transform_indices = @transform_0, window_bounds = array<i64: 8, 256>}, {transform_indices = @transform_1, window_bounds = array<i64: 8, 256>}, {transform_indices = @transform_2, window_bounds = array<i64: 8, 256>}, {transform_indices = @transform_3, window_bounds = array<i64: 8, 256>}]} {
    %c0 = arith.constant 0 : index
    %c0_0 = arith.constant 0 : index
    %0 = vector.load %arg1[%c0, %c0_0] : memref<8x256xf32, #tpu.memory_space<vmem>>, vector<8x256xf32>
    %c0_1 = arith.constant 0 : index
    %c0_2 = arith.constant 0 : index
    %1 = vector.load %arg2[%c0_1, %c0_2] : memref<8x256xf32, #tpu.memory_space<vmem>>, vector<8x256xf32>
    %2 = arith.addf %0, %1 : vector<8x256xf32>
    %c0_3 = arith.constant 0 : index
    %c0_4 = arith.constant 0 : index
    %3 = vector.load %arg3[%c0_3, %c0_4] : memref<8x256xf32, #tpu.memory_space<vmem>>, vector<8x256xf32>
    %4 = arith.addf %2, %3 : vector<8x256xf32>
    %c0_5 = arith.constant 0 : index
    %c0_6 = arith.constant 0 : index
    %5 = vector.load %arg4[%c0_5, %c0_6] : memref<8x256xf32, #tpu.memory_space<vmem>>, vector<8x256xf32>
    tpu.vector_store %arg4[%c0_5, %c0_6], %4 {strides = array<i32>} : memref<8x256xf32, #tpu.memory_space<vmem>>, vector<8x256xf32>,
    return
  }
  func.func @transform_0(%arg0: i32) -> (i32, i32) {
    %c0_i32 = arith.constant 0 : i32
    %c0_i32_0 = arith.constant 0 : i32
    return %arg0, %c0_i32 : i32, i32
  }
  func.func @transform_1(%arg0: i32) -> (i32, i32) {
    %c0_i32 = arith.constant 0 : i32
    %c0_i32_0 = arith.constant 0 : i32
    return %arg0, %c0_i32 : i32, i32
  }
  func.func @transform_2(%arg0: i32) -> (i32, i32) {
    %c0_i32 = arith.constant 0 : i32
    %c0_i32_0 = arith.constant 0 : i32
    return %arg0, %c0_i32 : i32, i32
  }
  func.func @transform_3(%arg0: i32) -> (i32, i32) {
    %c0_i32 = arith.constant 0 : i32
    %c0_i32_0 = arith.constant 0 : i32
    return %arg0, %c0_i32 : i32, i32
  }
}

</mosaic_0001>

<llo_original>
// kernel: tpu_custom_call.1
$region0: #{tpu_custom_call.1}
  #allocation0 [shape = 'u32[]', space=smem, size = 0x4, offset = 0x4, fixed_abs, tag = 'smem constant byte address 0x4 - core index']
  #allocation1 [shape = 'u32[144,128]{1,0:T(1,128)}', space=vmem, size = 0x12000, scoped, tag = 'internal scratch']
  %s0 = inlined_call_operand.hbm [shape: f32[8,256], index: 0, kind: input, shape index: {}]
  %s1 = inlined_call_operand.hbm [shape: f32[8,256], index: 1, kind: input, shape index: {}]
  %s2 = inlined_call_operand.hbm [shape: f32[8,256], index: 2, kind: input, shape index: {}]
  %s3 = inlined_call_operand.hbm [shape: f32[8,256], index: 3, kind: output, shape index: {}]
  %s4 = sld [smem:[#allocation0]]
  $region34: #{tpu_custom_call.1} parent=0
    _
  %s6 = ssub.s32 1, %s4
  %s7 = scalar_select 0, %s6, %s4
  $region1: #{tpu_custom_call.1} parent=0
    #allocation2 [shape = 'u8[8192]{0}', space=vmem, size = 0x2000, scoped, tag = 'input window, operand 0, single buffered']
    #allocation3 [shape = 's32[1]{0}', space=sflag, size = 0x4, scoped, tag = 'scoped memory for tpu_custom_call.1']
    #allocation4 [shape = 's32[1]{0}', space=sflag, size = 0x4, scoped, tag = 'scoped memory for tpu_custom_call.1']
    #allocation5 [shape = 'u8[8192]{0}', space=vmem, size = 0x2000, scoped, tag = 'input window, operand 1, single buffered']
    #allocation6 [shape = 's32[1]{0}', space=sflag, size = 0x4, scoped, tag = 'scoped memory for tpu_custom_call.1']
    #allocation7 [shape = 'u8[8192]{0}', space=vmem, size = 0x2000, scoped, tag = 'input window, operand 2, single buffered']
    #allocation8 [shape = 'u8[8192]{0}', space=vmem, size = 0x2000, scoped, tag = 'output window, operand 0, single buffered']
    %8 = vsyncpa [#allocation3], 0
    %9 = vsyncpa [#allocation6], 0
    %10 = vsyncpa [#allocation4], 0
    // Predicated region
    $region2: #{tpu_custom_call.1} parent=1 // pred_check
      _
    $region3: #{tpu_custom_call.1} parent=1 // pred_check_branch
      %12 = sbr.rel (0) target = $region5
    $region4: #{tpu_custom_call.1} parent=1 // pred_region
      %s14 = ssub.s32 256, 256
      %15 = vsyncadd [#allocation3], %s14
      %s17 = sshll.u32 [#allocation2], 4
      %s18 = int_to_ptr.vmem [resolvable:$true] %s17
      %20 = dma.hbm_to_vmem [thread:$0]  %s0, 256, %s18, [#allocation3]
    $region5: #{tpu_custom_call.1} parent=1 // pred_fallthru
      _
    // Predicated region
    $region6: #{tpu_custom_call.1} parent=1 // pred_check
      _
    $region7: #{tpu_custom_call.1} parent=1 // pred_check_branch
      %22 = sbr.rel (0) target = $region9
    $region8: #{tpu_custom_call.1} parent=1 // pred_region
      %s24 = ssub.s32 256, 256
      %25 = vsyncadd [#allocation6], %s24
      %s27 = sshll.u32 [#allocation5], 4
      %s28 = int_to_ptr.vmem [resolvable:$true] %s27
      %30 = dma.hbm_to_vmem [thread:$0]  %s1, 256, %s28, [#allocation6]
    $region9: #{tpu_custom_call.1} parent=1 // pred_fallthru
      _
    // Predicated region
    $region10: #{tpu_custom_call.1} parent=1 // pred_check
      _
    $region11: #{tpu_custom_call.1} parent=1 // pred_check_branch
      %32 = sbr.rel (0) target = $region13
    $region12: #{tpu_custom_call.1} parent=1 // pred_region
      %s34 = ssub.s32 256, 256
      %35 = vsyncadd [#allocation6], %s34
      %s37 = sshll.u32 [#allocation7], 4
      %s38 = int_to_ptr.vmem [resolvable:$true] %s37
      %40 = dma.hbm_to_vmem [thread:$0]  %s2, 256, %s38, [#allocation6]
    $region13: #{tpu_custom_call.1} parent=1 // pred_fallthru
      _
    // Predicated region
    $region14: #{tpu_custom_call.1} parent=1 // pred_check
      _
    $region15: #{tpu_custom_call.1} parent=1 // pred_check_branch
      %42 = sbr.rel (0) target = $region17
    $region16: #{tpu_custom_call.1} parent=1 // pred_region
      %43 = dma.done [#allocation3], 256
    $region17: #{tpu_custom_call.1} parent=1 // pred_fallthru
      _
    // Predicated region
    $region18: #{tpu_custom_call.1} parent=1 // pred_check
      _
    $region19: #{tpu_custom_call.1} parent=1 // pred_check_branch
      %45 = sbr.rel (0) target = $region21
    $region20: #{tpu_custom_call.1} parent=1 // pred_region
      %46 = dma.done [#allocation6], 256
    $region21: #{tpu_custom_call.1} parent=1 // pred_fallthru
      _
    // Predicated region
    $region22: #{tpu_custom_call.1} parent=1 // pred_check
      _
    $region23: #{tpu_custom_call.1} parent=1 // pred_check_branch
      %48 = sbr.rel (0) target = $region25
    $region24: #{tpu_custom_call.1} parent=1 // pred_region
      %49 = dma.done [#allocation6], 256
    $region25: #{tpu_custom_call.1} parent=1 // pred_fallthru
      _
    %v50 = vld [vmem:[#allocation2] sm:$0xff]
    %v51 = vld [vmem:[#allocation2 + $0x8] sm:$0xff]
    %v52 = vld [vmem:[#allocation5] sm:$0xff]
    %v53 = vld [vmem:[#allocation5 + $0x8] sm:$0xff]
    %v54 = vadd.f32 %v50, %v52
    %v55 = vadd.f32 %v51, %v53
    %v56 = vld [vmem:[#allocation7] sm:$0xff]
    %v57 = vld [vmem:[#allocation7 + $0x8] sm:$0xff]
    %v58 = vadd.f32 %v54, %v56
    %v59 = vadd.f32 %v55, %v57
    %60 = vst [vmem:[#allocation8] sm:$0xff] %v58
    %61 = vst [vmem:[#allocation8 + $0x8] sm:$0xff] %v59
    // Predicated region
    $region26: #{tpu_custom_call.1} parent=1 // pred_check
      _
    $region27: #{tpu_custom_call.1} parent=1 // pred_check_branch
      %63 = sbr.rel (0) target = $region29
    $region28: #{tpu_custom_call.1} parent=1 // pred_region
      %s65 = ssub.s32 256, 256
      %66 = vsyncadd [#allocation4], %s65
      %s68 = sshll.u32 [#allocation8], 4
      %s69 = int_to_ptr.vmem [resolvable:$true] %s68
      %71 = dma.vmem_to_hbm [thread:$0]  %s69, 256, %s3, [#allocation4]
    $region29: #{tpu_custom_call.1} parent=1 // pred_fallthru
      _
    // Predicated region
    $region30: #{tpu_custom_call.1} parent=1 // pred_check
      _
    $region31: #{tpu_custom_call.1} parent=1 // pred_check_branch
      %73 = sbr.rel (0) target = $region33
    $region32: #{tpu_custom_call.1} parent=1 // pred_region
      %74 = dma.done [#allocation4], 256
    $region33: #{tpu_custom_call.1} parent=1 // pred_fallthru
      _
    %75 = vsyncpa [#allocation3], 1
    %76 = vsyncpa [#allocation6], 1
    %77 = vsyncpa [#allocation4], 1

</llo_original>
